<compile_context>
chip_gen: v5e
topology: v5e:2x2
jax: 0.10.0
libtpu: 0.0.40
codegen_flags: <defaults>
</compile_context>

<pallas_src>
import jax
import jax.numpy as jnp
import numpy as np
from jax.experimental import pallas as pl
from jax.experimental.pallas import tpu as pltpu


# --------------------------- VMEM budget / S tiling --------------------------

_FORCE_MAX_TS = None  # test hook: cap the S tile to exercise the multi-tile paths


def _vmem_capacity_bytes():
    try:
        return int(pltpu.get_tpu_info().vmem_capacity_bytes)
    except Exception:
        return 64 * 1024 * 1024  # v7x physical VMEM (smallest current generation)


def _plan_s(S, bytes_per_s_col):
    """Split S into (tS, n_par, n_inner) with S == tS * n_par * n_inner.

    bytes_per_s_col: resident VMEM bytes per column of S (all double-buffered blocks).
    Returns (tS, n_par, n_inner, vmem_limit_bytes).
    """
    cap = _vmem_capacity_bytes()
    vmem_limit = int(min(cap * 3 // 4, 96 * 1024 * 1024))
    block_budget = vmem_limit // 2  # headroom for compiler scratch + small blocks
    if S % 128 != 0:
        # TODO(synk): pad/mask the tail for large lane-unaligned S; whole-S block here.
        return S, 1, 1, vmem_limit
    max_ts = max(128, (block_budget // max(int(bytes_per_s_col), 1)) // 128 * 128)
    if _FORCE_MAX_TS is not None:
        max_ts = min(max_ts, int(_FORCE_MAX_TS))
    if S <= max_ts:
        return S, 1, 1, vmem_limit
    n128 = S // 128
    d = 1
    for cand in range(1, n128 + 1):           # trace-time only; n128 divisor search
        if n128 % cand == 0 and cand * 128 <= max_ts:
            d = cand
    tS = d * 128
    n_tiles = n128 // d
    n_par = 2 if (n_tiles % 2 == 0 and n_tiles >= 2) else 1  # v7x 2nd-core chunk
    return tS, n_par, n_tiles // n_par, vmem_limit


# --------------------------------- kernels -----------------------------------


def _phi_csum_kernel(z_ref, w_ref, b_ref, score_ref, csum_ref):
    # z: (B,C,tS)  w: (1,C,1)  b: (1,) SMEM  score: (B,tS)  csum partial: (1,B,C)
    s = pl.program_id(1)

    @pl.when(s == 0)
    def _():
        csum_ref[...] = jnp.zeros_like(csum_ref)

    z = z_ref[...]
    # 1x1 conv == channel contraction: VPU broadcast-mul + sublane reduce (no M=1 MXU dot)
    score_ref[...] = jnp.sum(z * w_ref[...], axis=1) + b_ref[0]        # (B, tS)
    csum_ref[0] += jnp.sum(z, axis=-1)                                 # (B, C)


def _masked_gap_kernel(z_ref, w_ref, b_ref, thr_ref, gap_ref):
    # z: (B,C,tS)  w: (1,C,1)  b: (1,) SMEM  thr: (B,1)  gap partial: (1,B,C)
    s = pl.program_id(1)

    @pl.when(s == 0)
    def _():
        gap_ref[...] = jnp.zeros_like(gap_ref)

    z = z_ref[...]
    # recompute phi from the z tile already in VMEM (no score HBM read stream)
    phi = jnp.sum(z * w_ref[...], axis=1) + b_ref[0]                   # (B, tS)
    mask = (phi > thr_ref[...]).astype(jnp.float32)                    # (B, tS), strict >
    gap_ref[0] += jnp.sum(z * mask[:, None, :], axis=-1)               # (B, C)


def _beta1_fused_kernel(z_ref, w_ref, b_ref, sum_ref, minsum_ref, min_ref):
    # Single pass for beta==1: total sum, sum at the running-min score, running min.
    # sum/minsum partials: (1,B,C)   min partial: (1,B,1)
    s = pl.program_id(1)

    @pl.when(s == 0)
    def _():
        sum_ref[...] = jnp.zeros_like(sum_ref)
        minsum_ref[...] = jnp.zeros_like(minsum_ref)
        min_ref[...] = jnp.full_like(min_ref, jnp.inf)

    z = z_ref[...]
    phi = jnp.sum(z * w_ref[...], axis=1) + b_ref[0]                   # (B, tS)
    tile_min = jnp.min(phi, axis=-1, keepdims=True)                    # (B, 1)
    run_min = min_ref[0]                                               # (B, 1)
    new_min = jnp.minimum(run_min, tile_min)
    at_min = (phi == new_min).astype(jnp.float32)                      # (B, tS)
    contrib = jnp.sum(z * at_min[:, None, :], axis=-1)                 # (B, C)
    # if the min decreased, earlier "at min" contributions are stale -> reset
    minsum_ref[0] = jnp.where(new_min < run_min, contrib, minsum_ref[0] + contrib)
    sum_ref[0] += jnp.sum(z, axis=-1)
    min_ref[0] = new_min


def _modulate_kernel(x_ref, gate_ref, out_ref):
    # x/out: (B,C,tS)   gate: (B,C,1)  -- pure streaming broadcast multiply
    out_ref[...] = x_ref[...] * gate_ref[...]


# ------------------------------ pallas wrappers -------------------------------


def _phi_and_csum(z_cs, phi_w, phi_b):
    B, C, S = z_cs.shape
    bytes_per_col = 2 * (B * C + B) * 4           # z + score blocks, double-buffered
    tS, n_par, n_inner, vmem_limit = _plan_s(S, bytes_per_col)
    w3 = phi_w.reshape(1, C, 1).astype(jnp.float32)
    score, csum_p = pl.pallas_call(
        _phi_csum_kernel,
        out_shape=(
            jax.ShapeDtypeStruct((B, S), jnp.float32),
            jax.ShapeDtypeStruct((n_par, B, C), jnp.float32),
        ),
        grid=(n_par, n_inner),
        in_specs=[
            pl.BlockSpec((B, C, tS), lambda c, s: (0, 0, c * n_inner + s)),
            pl.BlockSpec((1, C, 1), lambda c, s: (0, 0, 0)),
            pl.BlockSpec(memory_space=pltpu.MemorySpace.SMEM),
        ],
        out_specs=(
            pl.BlockSpec((B, tS), lambda c, s: (0, c * n_inner + s)),
            pl.BlockSpec((1, B, C), lambda c, s: (c, 0, 0)),
        ),
        compiler_params=pltpu.CompilerParams(
            dimension_semantics=("parallel", "arbitrary"),
            vmem_limit_bytes=vmem_limit),
    )(z_cs, w3, phi_b)
    return score, jnp.sum(csum_p, axis=0)                              # (B,S), (B,C)


def _masked_gap_sum(z_cs, phi_w, phi_b, thr):
    B, C, S = z_cs.shape
    bytes_per_col = 2 * B * C * 4
    tS, n_par, n_inner, vmem_limit = _plan_s(S, bytes_per_col)
    w3 = phi_w.reshape(1, C, 1).astype(jnp.float32)
    gap_p = pl.pallas_call(
        _masked_gap_kernel,
        out_shape=jax.ShapeDtypeStruct((n_par, B, C), jnp.float32),
        grid=(n_par, n_inner),
        in_specs=[
            pl.BlockSpec((B, C, tS), lambda c, s: (0, 0, c * n_inner + s)),
            pl.BlockSpec((1, C, 1), lambda c, s: (0, 0, 0)),
            pl.BlockSpec(memory_space=pltpu.MemorySpace.SMEM),
            pl.BlockSpec((B, 1), lambda c, s: (0, 0)),
        ],
        out_specs=pl.BlockSpec((1, B, C), lambda c, s: (c, 0, 0)),
        compiler_params=pltpu.CompilerParams(
            dimension_semantics=("parallel", "arbitrary"),
            vmem_limit_bytes=vmem_limit),
    )(z_cs, w3, phi_b, thr)
    return jnp.sum(gap_p, axis=0)                                      # (B, C)


def _beta1_gap_sum(z_cs, phi_w, phi_b):
    B, C, S = z_cs.shape
    bytes_per_col = 2 * B * C * 4
    tS, n_par, n_inner, vmem_limit = _plan_s(S, bytes_per_col)
    w3 = phi_w.reshape(1, C, 1).astype(jnp.float32)
    psum, pminsum, pmin = pl.pallas_call(
        _beta1_fused_kernel,
        out_shape=(
            jax.ShapeDtypeStruct((n_par, B, C), jnp.float32),
            jax.ShapeDtypeStruct((n_par, B, C), jnp.float32),
            jax.ShapeDtypeStruct((n_par, B, 1), jnp.float32),
        ),
        grid=(n_par, n_inner),
        in_specs=[
            pl.BlockSpec((B, C, tS), lambda c, s: (0, 0, c * n_inner + s)),
            pl.BlockSpec((1, C, 1), lambda c, s: (0, 0, 0)),
            pl.BlockSpec(memory_space=pltpu.MemorySpace.SMEM),
        ],
        out_specs=(
            pl.BlockSpec((1, B, C), lambda c, s: (c, 0, 0)),
            pl.BlockSpec((1, B, C), lambda c, s: (c, 0, 0)),
            pl.BlockSpec((1, B, 1), lambda c, s: (c, 0, 0)),
        ),
        compiler_params=pltpu.CompilerParams(
            dimension_semantics=("parallel", "arbitrary"),
            vmem_limit_bytes=vmem_limit),
    )(z_cs, w3, phi_b)
    gmin = jnp.min(pmin, axis=0, keepdims=True)                        # (1, B, 1)
    sel = (pmin == gmin).astype(psum.dtype)                            # (n_par, B, 1)
    minsum = jnp.sum(pminsum * sel, axis=0)                            # (B, C)
    return jnp.sum(psum, axis=0) - minsum                              # sum of score > min(score)


def _modulate(x_cs, gate_bc1):
    B, C, S = x_cs.shape
    bytes_per_col = 2 * 2 * B * C * 4             # x in + out, double-buffered
    tS, n_par, n_inner, vmem_limit = _plan_s(S, bytes_per_col)
    n_tiles = n_par * n_inner
    return pl.pallas_call(
        _modulate_kernel,
        out_shape=jax.ShapeDtypeStruct((B, C, S), jnp.float32),
        grid=(n_tiles,),
        in_specs=[
            pl.BlockSpec((B, C, tS), lambda s: (0, 0, s)),
            pl.BlockSpec((B, C, 1), lambda s: (0, 0, 0)),
        ],
        out_specs=pl.BlockSpec((B, C, tS), lambda s: (0, 0, s)),
        compiler_params=pltpu.CompilerParams(
            dimension_semantics=("parallel",),
            vmem_limit_bytes=vmem_limit),
    )(x_cs, gate_bc1)


# -------------------------------- forward glue --------------------------------


def conditioning_layer_fwd(z_nchw, params, beta_percentage):
    """Returns (layer_out (B, C_out), per-channel spatial mean (B, C_in) or None)."""
    B, C, H, W = z_nchw.shape
    S = H * W
    z_cs = z_nchw.reshape(B, C, S).astype(jnp.float32)

    if beta_percentage >= 1.0:
        # k == S -> threshold is min(score); fused single pass, no csum / score output.
        gap = _beta1_gap_sum(z_cs, params["phi_w"], params["phi_b"]) * (1.0 / S)
        return gap @ params["mlp_wT"] + params["mlp_b"], None

    score, csum = _phi_and_csum(z_cs, params["phi_w"], params["phi_b"])
    # TODO(synk): torch.topk with beta*S==0 is ill-defined; clamp k to [1, S].
    k = max(1, min(int(beta_percentage * H * W), S))
    # TODO(synk): O(S log S) XLA sort on the critical path; a linear-time selection
    # (histogram / quantile over the materialized score) would help at very large S.
    thr = jax.lax.top_k(score, k)[0][:, -1]                            # (B,)
    gap = _masked_gap_sum(z_cs, params["phi_w"], params["phi_b"], thr[:, None]) * (1.0 / S)
    return gap @ params["mlp_wT"] + params["mlp_b"], csum * (1.0 / S)


def _conditioning_layer_tiny_jax(z_nchw, params, beta_percentage):
    # Degenerate 1x1-spatial path (CL_2): a Pallas launch would be pure fixed overhead.
    B, C, H, W = z_nchw.shape
    S = H * W
    zf = z_nchw.reshape(B, C, S)
    score = jnp.einsum("oc,bcs->bs", params["phi_w"], zf) + params["phi_b"][0]
    # TODO(synk): torch.topk with k=0 (1x1 spatial input) is ill-defined; clamp to [1, S].
    k = max(1, min(int(beta_percentage * S), S))
    thr = jax.lax.top_k(score, k)[0][:, -1:]
    mask = (score > thr).astype(zf.dtype)[:, None, :]
    gap = jnp.mean(zf * mask, axis=-1)
    return gap @ params["mlp_wT"] + params["mlp_b"]


def conditioning_block_fwd(x, proxy_IA_head, params):
    B, C, H, W = x.shape
    S = H * W

    cl1, px1 = conditioning_layer_fwd(x, params["cl1"], 0.3)           # px1 fused in kernel 1
    x_delta = jnp.sum(px1, axis=0, keepdims=True) - px1                # (B, C)
    cl2 = _conditioning_layer_tiny_jax(x_delta[:, :, None, None], params["cl2"], 0.3)
    cl3, _ = conditioning_layer_fwd(proxy_IA_head, params["cl3"], 1.0)

    feat = jnp.concatenate([cl1, cl2, cl3], axis=1)                    # (B, 2*C + P)
    gate = 1.0 + jnp.tanh(feat @ params["mlp_wT"] + params["mlp_b"])   # (B, C)
    out_cs = _modulate(x.reshape(B, C, S).astype(jnp.float32),
                       gate.astype(jnp.float32)[:, :, None])
    return out_cs.reshape(B, C, H, W)


# --------------------------- params / reference / main -------------------------


def _init_cl(key, dim):
    k1, k2, k3, k4 = jax.random.split(key, 4)
    lim = 1.0 / np.sqrt(dim)
    return {
        # Conv2d(dim, 1, 1) weight, kaiming_normal fan_out=1 -> std = sqrt(2)
        "phi_w": (jax.random.normal(k1, (1, dim)) * np.sqrt(2.0)).astype(jnp.float32),
        "phi_b": jax.random.uniform(k2, (1,), jnp.float32, -lim, lim),
        # Linear(dim, dim): stored transposed (in, out)
        "mlp_wT": jax.random.uniform(k3, (dim, dim), jnp.float32, -lim, lim),
        "mlp_b": jax.random.uniform(k4, (1, dim), jnp.float32, -lim, lim),
    }


def _ref_layer(z, p, beta_pct):
    B, C, H, W = z.shape
    S = H * W
    zf = z.reshape(B, C, S)
    score = jnp.einsum("oc,bcs->bs", p["phi_w"], zf) + p["phi_b"][0]
    k = max(1, min(int(beta_pct * H * W), S))
    thr = jax.lax.top_k(score, k)[0][:, -1:]
    mask = (score > thr).astype(zf.dtype)[:, None, :]
    gap = jnp.mean(zf * mask, axis=-1)
    return gap @ p["mlp_wT"] + p["mlp_b"], jnp.mean(zf, axis=-1)


def _ref_block(x, proxy, params):
    cl1, px1 = _ref_layer(x, params["cl1"], 0.3)
    x_delta = jnp.sum(px1, axis=0, keepdims=True) - px1
    cl2, _ = _ref_layer(x_delta[:, :, None, None], params["cl2"], 0.3)
    cl3, _ = _ref_layer(proxy, params["cl3"], 1.0)
    feat = jnp.concatenate([cl1, cl2, cl3], axis=1)
    a = 1.0 + jnp.tanh(feat @ params["mlp_wT"] + params["mlp_b"])
    return a[:, :, None, None] * x


if __name__ == "__main__":
    in_dim, proxy_dim = 8, 16
    B, H, W = 2, 32, 32          # S = 1024
    Hp, Wp = 16, 32              # proxy S = 512

    key = jax.random.PRNGKey(0)
    kx, kp, kc1, kc2, kc3, km1, km2 = jax.random.split(key, 7)

    x = jax.random.normal(kx, (B, in_dim, H, W), jnp.float32)
    proxy = jax.random.normal(kp, (B, proxy_dim, Hp, Wp), jnp.float32)

    D = 2 * in_dim + proxy_dim
    lim = 1.0 / np.sqrt(D)
    params = {
        "cl1": _init_cl(kc1, in_dim),
        "cl2": _init_cl(kc2, in_dim),
        "cl3": _init_cl(kc3, proxy_dim),
        "mlp_wT": jax.random.uniform(km1, (D, in_dim), jnp.float32, -lim, lim),
        "mlp_b": jax.random.uniform(km2, (1, in_dim), jnp.float32, -lim, lim),
    }

    ref = np.asarray(_ref_block(x, proxy, params))

    # Default plan: byte-sized tiles -> single whole-array blocks at these shapes.
    out = jax.block_until_ready(conditioning_block_fwd(x, proxy, params))
    assert out.shape == x.shape
    np.testing.assert_allclose(np.asarray(out), ref, rtol=1e-3, atol=1e-3)

    # Forced small tiles: exercise the multi-tile / chunk-parallel accumulation paths.
    _FORCE_MAX_TS = 128
    out2 = jax.block_until_ready(conditioning_block_fwd(x, proxy, params))
    np.testing.assert_allclose(np.asarray(out2), ref, rtol=1e-3, atol=1e-3)
    _FORCE_MAX_TS = None

    print("KERNEL_OK")
</pallas_src>

<mosaic_0001>
module attributes {stable_mosaic.version = 11 : i64} {
  func.func @_phi_csum_kernel(%arg0: i32, %arg1: i32, %arg2: memref<2x8x1024xf32, #tpu.memory_space<vmem>>, %arg3: memref<1x8x1xf32, #tpu.memory_space<vmem>>, %arg4: memref<1xf32, #tpu.memory_space<smem>>, %arg5: memref<2x1024xf32, #tpu.memory_space<vmem>>, %arg6: memref<1x2x8xf32, #tpu.memory_space<vmem>>) attributes {dimension_semantics = [#tpu.dimension_semantics<parallel>, #tpu.dimension_semantics<arbitrary>], iteration_bounds = array<i64: 1, 1>, scalar_prefetch = 0 : i64, scratch_operands = 0 : i64, tpu.core_type = #tpu.core_type<tc>, window_params = [{transform_indices = @transform_0, window_bounds = array<i64: 2, 8, 1024>}, {pipeline_mode = #tpu.pipeline_mode<synchronous>, transform_indices = @transform_1, window_bounds = array<i64: 1, 8, 1>}, {transform_indices = @transform_2, window_bounds = array<i64: 1>}, {transform_indices = @transform_3, window_bounds = array<i64: 2, 1024>}, {transform_indices = @transform_4, window_bounds = array<i64: 1, 2, 8>}]} {
    %c0_i32 = arith.constant 0 : i32
    %0 = arith.cmpi eq, %arg1, %c0_i32 : i32
    %1 = arith.extui %0 : i1 to i32
    %c0_i32_0 = arith.constant 0 : i32
    %2 = arith.cmpi ne, %1, %c0_i32_0 : i32
    scf.if %2 {
      %cst_16 = arith.constant 0.000000e+00 : f32
      %19 = vector.broadcast %cst_16 : f32 to vector<1x2x8xf32>
      %c0_17 = arith.constant 0 : index
      %c0_18 = arith.constant 0 : index
      %c0_19 = arith.constant 0 : index
      %20 = vector.load %arg6[%c0_17, %c0_18, %c0_19] : memref<1x2x8xf32, #tpu.memory_space<vmem>>, vector<1x2x8xf32>
      tpu.vector_store %arg6[%c0_17, %c0_18, %c0_19], %19 {strides = array<i32>} : memref<1x2x8xf32, #tpu.memory_space<vmem>>, vector<1x2x8xf32>,
    } else {
    }
    %c0 = arith.constant 0 : index
    %c0_1 = arith.constant 0 : index
    %c0_2 = arith.constant 0 : index
    %3 = vector.load %arg2[%c0, %c0_1, %c0_2] : memref<2x8x1024xf32, #tpu.memory_space<vmem>>, vector<2x8x1024xf32>
    %c0_3 = arith.constant 0 : index
    %c0_4 = arith.constant 0 : index
    %c0_5 = arith.constant 0 : index
    %4 = vector.load %arg3[%c0_3, %c0_4, %c0_5] : memref<1x8x1xf32, #tpu.memory_space<vmem>>, vector<1x8x1xf32>
    %5 = vector.broadcast %4 : vector<1x8x1xf32> to vector<2x8x1024xf32>
    %6 = arith.mulf %3, %5 : vector<2x8x1024xf32>
    %cst = arith.constant dense<0.000000e+00> : vector<2x1024xf32>
    %7 = vector.multi_reduction <add>, %6, %cst [1] : vector<2x8x1024xf32> to vector<2x1024xf32>
    %c0_6 = arith.constant 0 : index
    %8 = memref.load %arg4[%c0_6] : memref<1xf32, #tpu.memory_space<smem>>
    %9 = vector.broadcast %8 : f32 to vector<2x1024xf32>
    %10 = arith.addf %7, %9 : vector<2x1024xf32>
    %c0_7 = arith.constant 0 : index
    %c0_8 = arith.constant 0 : index
    %11 = vector.load %arg5[%c0_7, %c0_8] : memref<2x1024xf32, #tpu.memory_space<vmem>>, vector<2x1024xf32>
    tpu.vector_store %arg5[%c0_7, %c0_8], %10 {strides = array<i32>} : memref<2x1024xf32, #tpu.memory_space<vmem>>, vector<2x1024xf32>,
    %c0_9 = arith.constant 0 : index
    %c0_10 = arith.constant 0 : index
    %c0_11 = arith.constant 0 : index
    %12 = vector.load %arg6[%c0_9, %c0_10, %c0_11] : memref<1x2x8xf32, #tpu.memory_space<vmem>>, vector<1x2x8xf32>
    %13 = vector.shape_cast %12 : vector<1x2x8xf32> to vector<2x8xf32>
    %cst_12 = arith.constant dense<0.000000e+00> : vector<2x8xf32>
    %14 = vector.multi_reduction <add>, %3, %cst_12 [2] : vector<2x8x1024xf32> to vector<2x8xf32>
    %15 = arith.addf %13, %14 : vector<2x8xf32>
    %c0_13 = arith.constant 0 : index
    %c0_14 = arith.constant 0 : index
    %c0_15 = arith.constant 0 : index
    %16 = vector.load %arg6[%c0_13, %c0_14, %c0_15] : memref<1x2x8xf32, #tpu.memory_space<vmem>>, vector<1x2x8xf32>
    %17 = vector.shape_cast %16 : vector<1x2x8xf32> to vector<2x8xf32>
    %18 = vector.shape_cast %15 : vector<2x8xf32> to vector<1x2x8xf32>
    tpu.vector_store %arg6[%c0_13, %c0_14, %c0_15], %18 {strides = array<i32>} : memref<1x2x8xf32, #tpu.memory_space<vmem>>, vector<1x2x8xf32>,
    return
  }
  func.func @transform_0(%arg0: i32, %arg1: i32) -> (i32, i32, i32) {
    %c1_i32 = arith.constant 1 : i32
    %0 = arith.muli %arg0, %c1_i32 : i32
    %1 = arith.addi %0, %arg1 : i32
    %c0_i32 = arith.constant 0 : i32
    %c0_i32_0 = arith.constant 0 : i32
    %c0_i32_1 = arith.constant 0 : i32
    return %c0_i32, %c0_i32_0, %1 : i32, i32, i32
  }
  func.func @transform_1(%arg0: i32, %arg1: i32) -> (i32, i32, i32) {
    %c0_i32 = arith.constant 0 : i32
    %c0_i32_0 = arith.constant 0 : i32
    %c0_i32_1 = arith.constant 0 : i32
    %c0_i32_2 = arith.constant 0 : i32
    return %c0_i32, %c0_i32_0, %c0_i32_1 : i32, i32, i32
  }
  func.func @transform_2(%arg0: i32, %arg1: i32) -> i32 {
    %c0_i32 = arith.constant 0 : i32
    %c0_i32_0 = arith.constant 0 : i32
    return %c0_i32 : i32
  }
  func.func @transform_3(%arg0: i32, %arg1: i32) -> (i32, i32) {
    %c1_i32 = arith.constant 1 : i32
    %0 = arith.muli %arg0, %c1_i32 : i32
    %1 = arith.addi %0, %arg1 : i32
    %c0_i32 = arith.constant 0 : i32
    %c0_i32_0 = arith.constant 0 : i32
    return %c0_i32, %1 : i32, i32
  }
  func.func @transform_4(%arg0: i32, %arg1: i32) -> (i32, i32, i32) {
    %c0_i32 = arith.constant 0 : i32
    %c0_i32_0 = arith.constant 0 : i32
    %c0_i32_1 = arith.constant 0 : i32
    return %arg0, %c0_i32, %c0_i32_0 : i32, i32, i32
  }
}

</mosaic_0001>

<llo_original>
// kernel: tpu_custom_call.1
$region0: #{tpu_custom_call.1}
  #allocation0 [shape = 'u32[]', space=smem, size = 0x4, offset = 0x4, fixed_abs, tag = 'smem constant byte address 0x4 - core index']
  #allocation1 [shape = 'u32[72,128]{1,0:T(1,128)}', space=vmem, size = 0x9000, scoped, tag = 'internal scratch']
  #allocation2 [shape = 'f32[1]{0:T(128)S(6)}', space=smem, size = 0x200, scoped, tag = 'scoped memory for tpu_custom_call.1']
  %s0 = inlined_call_operand.hbm [shape: f32[2,8,1024], index: 0, kind: input, shape index: {}]
  %s1 = inlined_call_operand.vmem [shape: f32[1,8,1], index: 1, kind: input, shape index: {}]
  %s2 = inlined_call_operand.<no memory space> [shape: f32[1], index: 2, kind: input, shape index: {}]
  %s3 = inlined_call_operand.hbm [shape: f32[2,1024], index: 3, kind: output, shape index: {0}]
  %s4 = inlined_call_operand.hbm [shape: f32[1,2,8], index: 4, kind: output, shape index: {1}]
  %5 = xla_tuple %s3, %s4
  %s6 = sld [smem:[#allocation0]]
  $region38: #{tpu_custom_call.1} parent=0
    _
  %s8 = ssub.s32 1, %s6
  %s9 = scalar_select 0, %s8, %s6
  %10 = sst [smem:[#allocation2]] %s2
  $region1: #{tpu_custom_call.1} parent=0
    #allocation3 [shape = 'u8[65536]{0}', space=vmem, size = 0x10000, scoped, tag = 'input window, operand 0, single buffered']
    #allocation4 [shape = 's32[1]{0}', space=sflag, size = 0x4, scoped, tag = 'scoped memory for tpu_custom_call.1']
    #allocation5 [shape = 's32[1]{0}', space=sflag, size = 0x4, scoped, tag = 'scoped memory for tpu_custom_call.1']
    #allocation6 [shape = 'u8[8192]{0}', space=vmem, size = 0x2000, scoped, tag = 'output window, operand 0, single buffered']
    #allocation7 [shape = 'u8[1024]{0}', space=vmem, size = 0x400, scoped, tag = 'output window, operand 1, single buffered']
    #allocation8 [shape = 's32[1]{0}', space=sflag, size = 0x4, scoped, tag = 'scoped memory for tpu_custom_call.1']
    %11 = vsyncpa [#allocation4], 0
    %12 = vsyncpa [#allocation5], 0
    %13 = vsyncpa [#allocation8], 0
    // Predicated region
    $region2: #{tpu_custom_call.1} parent=1 // pred_check
      _
    $region3: #{tpu_custom_call.1} parent=1 // pred_check_branch
      %15 = sbr.rel (0) target = $region5
    $region4: #{tpu_custom_call.1} parent=1 // pred_region
      %s16 = sadd.s32 0, 0
      %s17 = smul.u32 8, %s16
      %19 = vsyncadd [#allocation4], 0
      %s20 = smul.addr %s17, 8
      %s21 = scalar_lea.hbm %s0, %s20
      %s22 = sshll.u32 %s21, 4
      %s23 = int_to_ptr.hbm [resolvable:$true] %s22
      %s24 = sshll.u32 [#allocation3], 4
      %s25 = int_to_ptr.vmem [resolvable:$true] %s24
      %30 = dma.hbm_to_vmem [thread:$0]  %s23, 2048, %s25, [#allocation4], 1024, 1024, 64
    $region5: #{tpu_custom_call.1} parent=1 // pred_fallthru
      _
    // Predicated region
    $region6: #{tpu_custom_call.1} parent=1 // pred_check
      _
    $region7: #{tpu_custom_call.1} parent=1 // pred_check_branch
      %32 = sbr.rel (0) target = $region9
    $region8: #{tpu_custom_call.1} parent=1 // pred_region
      _
    $region9: #{tpu_custom_call.1} parent=1 // pred_fallthru
      _
    // Predicated region
    $region10: #{tpu_custom_call.1} parent=1 // pred_check
      _
    $region11: #{tpu_custom_call.1} parent=1 // pred_check_branch
      %34 = sbr.rel (0) target = $region13
    $region12: #{tpu_custom_call.1} parent=1 // pred_region
      _
    $region13: #{tpu_custom_call.1} parent=1 // pred_fallthru
      _
    // Predicated region
    $region14: #{tpu_custom_call.1} parent=1 // pred_check
      _
    $region15: #{tpu_custom_call.1} parent=1 // pred_check_branch
      %36 = sbr.rel (0) target = $region17
    $region16: #{tpu_custom_call.1} parent=1 // pred_region
      %38 = dma.done [#allocation4], 2048
    $region17: #{tpu_custom_call.1} parent=1 // pred_fallthru
      _
    %s39 = sadd.s32 0, 0
    %s40 = smul.u32 8, %s39
    %s41 = sadd.s32 0, 0
    %s42 = smul.u32 8, %s41
    %p43 = scmp.eq.s32.totalorder 0, 0
    // Predicated region
    $region18: #{tpu_custom_call.1} parent=1 // pred_check
      %p44 = pneg %p43
    $region19: #{tpu_custom_call.1} parent=1 // pred_check_branch
      %46 = sbr.rel (%p44) target = $region21
    $region20: #{tpu_custom_call.1} parent=1 // pred_region
      %vm47 = vcmask 58368
      %48 = vst.msk [vmem:[#allocation7] sm:$0x3] %vm47, 0.0
    $region21: #{tpu_custom_call.1} parent=1 // pred_fallthru
      _
    %v49 = vld [vmem:[#allocation3] sm:$0xff]
    %v50 = vld [vmem:[#allocation3 + $0x8] sm:$0xff]
    %v51 = vld [vmem:[#allocation3 + $0x10] sm:$0xff]
    %v52 = vld [vmem:[#allocation3 + $0x18] sm:$0xff]
    %v53 = vld [vmem:[#allocation3 + $0x20] sm:$0xff]
    %v54 = vld [vmem:[#allocation3 + $0x28] sm:$0xff]
    %v55 = vld [vmem:[#allocation3 + $0x30] sm:$0xff]
    %v56 = vld [vmem:[#allocation3 + $0x38] sm:$0xff]
    %v57 = vld [vmem:[#allocation3 + $0x40] sm:$0xff]
    %v58 = vld [vmem:[#allocation3 + $0x48] sm:$0xff]
    %v59 = vld [vmem:[#allocation3 + $0x50] sm:$0xff]
    %v60 = vld [vmem:[#allocation3 + $0x58] sm:$0xff]
    %v61 = vld [vmem:[#allocation3 + $0x60] sm:$0xff]
    %v62 = vld [vmem:[#allocation3 + $0x68] sm:$0xff]
    %v63 = vld [vmem:[#allocation3 + $0x70] sm:$0xff]
    %v64 = vld [vmem:[#allocation3 + $0x78] sm:$0xff]
    %v65 = vld [vmem:[%s1] sm:$0xff]
    %67 = vset.pattern.permute.xlu0 0
    %68 = vperm.xlu0 %67, %v65
    %v69 = vpop.permute.xlu0 %68
    %v71 = vmul.f32 %v49, %v69
    %v72 = vmul.f32 %v50, %v69
    %v73 = vmul.f32 %v51, %v69
    %v74 = vmul.f32 %v52, %v69
    %v75 = vmul.f32 %v53, %v69
    %v76 = vmul.f32 %v54, %v69
    %v77 = vmul.f32 %v55, %v69
    %v78 = vmul.f32 %v56, %v69
    %v79 = vmul.f32 %v57, %v69
    %v80 = vmul.f32 %v58, %v69
    %v81 = vmul.f32 %v59, %v69
    %v82 = vmul.f32 %v60, %v69
    %v83 = vmul.f32 %v61, %v69
    %v84 = vmul.f32 %v62, %v69
    %v85 = vmul.f32 %v63, %v69
    %v86 = vmul.f32 %v64, %v69
    %v87 = vrot.slane %v71, 4
    %v88 = vadd.f32 %v71, %v87
    %v89 = vrot.slane %v88, 2
    %v90 = vadd.f32 %v88, %v89
    %v91 = vrot.slane %v90, 1
    %v92 = vadd.f32 %v90, %v91
    %v93 = vrot.slane %v72, 4
    %v94 = vadd.f32 %v72, %v93
    %v95 = vrot.slane %v94, 2
    %v96 = vadd.f32 %v94, %v95
    %v97 = vrot.slane %v96, 1
    %v98 = vadd.f32 %v96, %v97
    %v99 = vrot.slane %v73, 4
    %v100 = vadd.f32 %v73, %v99
    %v101 = vrot.slane %v100, 2
    %v102 = vadd.f32 %v100, %v101
    %v103 = vrot.slane %v102, 1
    %v104 = vadd.f32 %v102, %v103
    %v105 = vrot.slane %v74, 4
    %v106 = vadd.f32 %v74, %v105
    %v107 = vrot.slane %v106, 2
    %v108 = vadd.f32 %v106, %v107
    %v109 = vrot.slane %v108, 1
    %v110 = vadd.f32 %v108, %v109
    %v111 = vrot.slane %v75, 4
    %v112 = vadd.f32 %v75, %v111
    %v113 = vrot.slane %v112, 2
    %v114 = vadd.f32 %v112, %v113
    %v115 = vrot.slane %v114, 1
    %v116 = vadd.f32 %v114, %v115
    %v117 = vrot.slane %v76, 4
    %v118 = vadd.f32 %v76, %v117
    %v119 = vrot.slane %v118, 2
    %v120 = vadd.f32 %v118, %v119
    %v121 = vrot.slane %v120, 1
    %v122 = vadd.f32 %v120, %v121
    %v123 = vrot.slane %v77, 4
    %v124 = vadd.f32 %v77, %v123
    %v125 = vrot.slane %v124, 2
    %v126 = vadd.f32 %v124, %v125
    %v127 = vrot.slane %v126, 1
    %v128 = vadd.f32 %v126, %v127
    %v129 = vrot.slane %v78, 4
    %v130 = vadd.f32 %v78, %v129
    %v131 = vrot.slane %v130, 2
    %v132 = vadd.f32 %v130, %v131
    %v133 = vrot.slane %v132, 1
    %v134 = vadd.f32 %v132, %v133
    %v135 = vrot.slane %v79, 4
    %v136 = vadd.f32 %v79, %v135
    %v137 = vrot.slane %v136, 2
    %v138 = vadd.f32 %v136, %v137
    %v139 = vrot.slane %v138, 1
    %v140 = vadd.f32 %v138, %v139
    %v141 = vrot.slane %v80, 4
    %v142 = vadd.f32 %v80, %v141
    %v143 = vrot.slane %v142, 2
    %v144 = vadd.f32 %v142, %v143
    %v145 = vrot.slane %v144, 1
    %v146 = vadd.f32 %v144, %v145
    %v147 = vrot.slane %v81, 4
    %v148 = vadd.f32 %v81, %v147
    %v149 = vrot.slane %v148, 2
    %v150 = vadd.f32 %v148, %v149
    %v151 = vrot.slane %v150, 1
    %v152 = vadd.f32 %v150, %v151
    %v153 = vrot.slane %v82, 4
    %v154 = vadd.f32 %v82, %v153
    %v155 = vrot.slane %v154, 2
    %v156 = vadd.f32 %v154, %v155
    %v157 = vrot.slane %v156, 1
    %v158 = vadd.f32 %v156, %v157
    %v159 = vrot.slane %v83, 4
    %v160 = vadd.f32 %v83, %v159
    %v161 = vrot.slane %v160, 2
    %v162 = vadd.f32 %v160, %v161
    %v163 = vrot.slane %v162, 1
    %v164 = vadd.f32 %v162, %v163
    %v165 = vrot.slane %v84, 4
    %v166 = vadd.f32 %v84, %v165
    %v167 = vrot.slane %v166, 2
    %v168 = vadd.f32 %v166, %v167
    %v169 = vrot.slane %v168, 1
    %v170 = vadd.f32 %v168, %v169
    %v171 = vrot.slane %v85, 4
    %v172 = vadd.f32 %v85, %v171
    %v173 = vrot.slane %v172, 2
    %v174 = vadd.f32 %v172, %v173
    %v175 = vrot.slane %v174, 1
    %v176 = vadd.f32 %v174, %v175
    %v177 = vrot.slane %v86, 4
    %v178 = vadd.f32 %v86, %v177
    %v179 = vrot.slane %v178, 2
    %v180 = vadd.f32 %v178, %v179
    %v181 = vrot.slane %v180, 1
    %v182 = vadd.f32 %v180, %v181
    %s183 = sld [smem:[#allocation2]]
    %v184 = vstv %s183
    %v185 = vadd.f32 %v92, %v184
    %v186 = vadd.f32 %v98, %v184
    %v187 = vadd.f32 %v104, %v184
    %v188 = vadd.f32 %v110, %v184
    %v189 = vadd.f32 %v116, %v184
    %v190 = vadd.f32 %v122, %v184
    %v191 = vadd.f32 %v128, %v184
    %v192 = vadd.f32 %v134, %v184
    %v193 = vadd.f32 %v140, %v184
    %v194 = vadd.f32 %v146, %v184
    %v195 = vadd.f32 %v152, %v184
    %v196 = vadd.f32 %v158, %v184
    %v197 = vadd.f32 %v164, %v184
    %v198 = vadd.f32 %v170, %v184
    %v199 = vadd.f32 %v176, %v184
    %v200 = vadd.f32 %v182, %v184
    %v217 = vrot.slane %v186, 6
    %v218 = vrot.slane %v187, 4
    %v219 = vrot.slane %v188, 2
    %v220 = vrot.slane %v190, 6
    %v221 = vrot.slane %v191, 4
    %v222 = vrot.slane %v192, 2
    %v223 = vrot.slane %v194, 6
    %v224 = vrot.slane %v195, 4
    %v225 = vrot.slane %v196, 2
    %v226 = vrot.slane %v198, 6
    %v227 = vrot.slane %v199, 4
    %v228 = vrot.slane %v200, 2
    %vm229 = vcmask 1041408
    %v230 = vsel %vm229, %v185, %v217
    %vm231 = vcmask 1045508
    %v232 = vsel %vm231, %v218, %v219
    %vm233 = vcmask 1043456
    %v234 = vsel %vm233, %v230, %v232
    %v235 = vsel %vm229, %v189, %v220
    %v236 = vsel %vm231, %v221, %v222
    %v237 = vsel %vm233, %v235, %v236
    %v238 = vsel %vm229, %v193, %v223
    %v239 = vsel %vm231, %v224, %v225
    %v240 = vsel %vm233, %v238, %v239
    %v241 = vsel %vm229, %v197, %v226
    %v242 = vsel %vm231, %v227, %v228
    %v243 = vsel %vm233, %v241, %v242
    %vm244 = vcmask 1044484
    %v245 = vsel %vm244, %v234, %v234
    %vm246 = vcmask 1046534
    %v247 = vsel %vm246, %v234, %v245
    %v248 = vrot.slane %v240, 7
    %vm249 = vcmask 1041409
    %v250 = vsel %vm249, %v248, %v247
    %vm251 = vcmask 1043459
    %v252 = vsel %vm251, %v248, %v250
    %vm253 = vcmask 1045509
    %v254 = vsel %vm253, %v248, %v252
    %vm255 = vcmask 1047559
    %v256 = vsel %vm255, %v248, %v254
    %v257 = vsel %vm244, %v237, %v237
    %v258 = vsel %vm246, %v237, %v257
    %v259 = vrot.slane %v243, 7
    %v260 = vsel %vm249, %v259, %v258
    %v261 = vsel %vm251, %v259, %v260
    %v262 = vsel %vm253, %v259, %v261
    %v263 = vsel %vm255, %v259, %v262
    %266 = vst [vmem:[#allocation6] sm:$0xff] %v256
    %267 = vst [vmem:[#allocation6 + $0x8] sm:$0xff] %v263
    %v268 = vld [vmem:[#allocation7] sm:$0x3]
    %v269 = vadd.f32 %v49, %v50
    %v270 = vadd.f32 %v269, %v51
    %v271 = vadd.f32 %v270, %v52
    %v272 = vadd.f32 %v271, %v53
    %v273 = vadd.f32 %v272, %v54
    %v274 = vadd.f32 %v273, %v55
    %v275 = vadd.f32 %v274, %v56
    %276 = vadd.xlane.f32.xlu0 %v275
    %v277 = vpop.xlane.xlu0 %276
    %v278 = vadd.f32 %v57, %v58
    %v279 = vadd.f32 %v278, %v59
    %v280 = vadd.f32 %v279, %v60
    %v281 = vadd.f32 %v280, %v61
    %v282 = vadd.f32 %v281, %v62
    %v283 = vadd.f32 %v282, %v63
    %v284 = vadd.f32 %v283, %v64
    %285 = vadd.xlane.f32.xlu0 %v284
    %v286 = vpop.xlane.xlu0 %285
    %v289 = vlaneseq
    %v290 = vand.u32 %v289, 127
    %v291 = vperm.slane %v277, %v290
    %v292 = vperm.slane %v286, %v290
    %v293 = vsel %vm249, %v292, %v291
    %v295 = vadd.f32 %v268, %v293
    %vm296 = vcmask 58368
    %297 = vst.msk [vmem:[#allocation7] sm:$0x3] %vm296, %v295
    // Predicated region
    $region22: #{tpu_custom_call.1} parent=1 // pred_check
      _
    $region23: #{tpu_custom_call.1} parent=1 // pred_check_branch
      %299 = sbr.rel (0) target = $region25
    $region24: #{tpu_custom_call.1} parent=1 // pred_region
      %s300 = sadd.s32 0, 0
      %s301 = smul.u32 8, %s300
      %303 = vsyncadd [#allocation5], 0
      %s304 = smul.addr %s301, 2
      %s305 = scalar_lea.hbm %s3, %s304
      %s307 = sshll.u32 [#allocation6], 4
      %s308 = int_to_ptr.vmem [resolvable:$true] %s307
      %s309 = sshll.u32 %s305, 4
      %s310 = int_to_ptr.hbm [resolvable:$true] %s309
      %312 = dma.vmem_to_hbm [thread:$0]  %s308, 256, %s310, [#allocation5]
    $region25: #{tpu_custom_call.1} parent=1 // pred_fallthru
      _
    // Predicated region
    $region26: #{tpu_custom_call.1} parent=1 // pred_check
      _
    $region27: #{tpu_custom_call.1} parent=1 // pred_check_branch
      %314 = sbr.rel (0) target = $region29
    $region28: #{tpu_custom_call.1} parent=1 // pred_region
      %316 = vsyncadd [#allocation8], 0
      %s318 = sshll.u32 [#allocation7], 4
      %s319 = int_to_ptr.vmem [resolvable:$true] %s318
      %s320 = sshll.u32 %s4, 4
      %s321 = int_to_ptr.hbm [resolvable:$true] %s320
      %323 = dma.vmem_to_hbm [thread:$0]  %s319, 32, %s321, [#allocation8]
    $region29: #{tpu_custom_call.1} parent=1 // pred_fallthru
      _
    // Predicated region
    $region30: #{tpu_custom_call.1} parent=1 // pred_check
      _
    $region31: #{tpu_custom_call.1} parent=1 // pred_check_branch
      %325 = sbr.rel (0) target = $region33
    $region32: #{tpu_custom_call.1} parent=1 // pred_region
      %327 = dma.done [#allocation5], 256
    $region33: #{tpu_custom_call.1} parent=1 // pred_fallthru
      _
    // Predicated region
    $region34: #{tpu_custom_call.1} parent=1 // pred_check
      _
    $region35: #{tpu_custom_call.1} parent=1 // pred_check_branch
      %329 = sbr.rel (0) target = $region37
    $region36: #{tpu_custom_call.1} parent=1 // pred_region
      %331 = dma.done [#allocation8], 32
    $region37: #{tpu_custom_call.1} parent=1 // pred_fallthru
      _
    %332 = vsyncpa [#allocation4], 1
    %333 = vsyncpa [#allocation5], 1
    %334 = vsyncpa [#allocation8], 1

</llo_original>
